<compile_context>
chip_gen: v6e
topology: v6e:2x2x1
jax: 0.10.0
libtpu: 0.0.40
codegen_flags: <defaults>
</compile_context>

<pallas_src>
import functools

import jax
import jax.numpy as jnp
from jax.experimental import pallas as pl
from jax.experimental.pallas import tpu as pltpu

# ---------------- small synthetic BERT config ----------------
VOCAB = 100
TYPE_VOCAB = 2
MAX_POS = 16
HIDDEN = 32
HEADS = 2
HEAD_DIM = HIDDEN // HEADS
INTER = 64
LAYERS = 2
EPS = 1e-12

_GELU_C = 0.7978845608028654  # sqrt(2/pi)


def _layernorm(h, g, b):
    mu = jnp.mean(h, axis=-1, keepdims=True)
    var = jnp.mean(jnp.square(h - mu), axis=-1, keepdims=True)
    return ((h - mu) * jax.lax.rsqrt(var + EPS)) * g + b


def _gelu_tanh(x):
    # TODO(synk): HF BERT uses exact erf-GELU; tanh approximation used for safe TPU lowering.
    return 0.5 * x * (1.0 + jnp.tanh(_GELU_C * (x + 0.044715 * x * x * x)))


# ---------------- Pallas kernels ----------------
def _matmul_bias_kernel(x_ref, w_ref, b_ref, o_ref):
    """Fused QKV projection: (TM, D) @ (D, 3D) + bias."""
    acc = jnp.dot(x_ref[...], w_ref[...], preferred_element_type=jnp.float32)
    o_ref[...] = (acc + b_ref[...]).astype(o_ref.dtype)


def _ln_kernel(x_ref, g_ref, b_ref, o_ref):
    """Plain LayerNorm over the lane (hidden) axis, row-tiled."""
    o_ref[...] = _layernorm(x_ref[...], g_ref[...], b_ref[...]).astype(o_ref.dtype)


def _attn_block_kernel(qkv_ref, x_ref, m_ref, wo_ref, bo_ref, g_ref, b_ref, o_ref, *, heads):
    """Per-batch fused: multi-head attention + output proj + residual add + LN.

    qkv_ref: (S, 3D) with the 1/sqrt(dh) scale pre-folded into the Q section.
    x_ref  : (S, D)  residual input.
    m_ref  : (1, S)  additive key mask (0 / -1e9).
    """
    seq, d3 = qkv_ref.shape
    d = d3 // 3
    head_dim = d // heads

    qkv = qkv_ref[...]
    m = m_ref[...]  # (1, S), broadcasts over query rows
    q = qkv[:, :d]
    k = qkv[:, d:2 * d]
    v = qkv[:, 2 * d:]

    ctx_heads = []
    for h in range(heads):
        sl = slice(h * head_dim, (h + 1) * head_dim)
        qh, kh, vh = q[:, sl], k[:, sl], v[:, sl]
        s = jnp.dot(qh, kh.T, preferred_element_type=jnp.float32) + m  # (S, S)
        s = s - jnp.max(s, axis=-1, keepdims=True)
        p = jnp.exp(s)
        p = p * pl.reciprocal(jnp.sum(p, axis=-1, keepdims=True), approx=True)
        ctx_heads.append(jnp.dot(p, vh, preferred_element_type=jnp.float32))
    ctx = jnp.concatenate(ctx_heads, axis=-1)  # (S, D) lane-dense

    attn_out = jnp.dot(ctx, wo_ref[...], preferred_element_type=jnp.float32) + bo_ref[...]
    o_ref[...] = _layernorm(x_ref[...] + attn_out, g_ref[...], b_ref[...]).astype(o_ref.dtype)


def _ffn_block_kernel(x_ref, wi_ref, bi_ref, wo_ref, bo_ref, g_ref, b_ref, o_ref):
    """Row-tiled fused FFN: linear + GELU + linear + residual add + LN.

    The (TILE_M, INTER) intermediate never leaves VMEM.
    """
    x = x_ref[...]
    inter = jnp.dot(x, wi_ref[...], preferred_element_type=jnp.float32) + bi_ref[...]
    inter = _gelu_tanh(inter)
    ffn = jnp.dot(inter, wo_ref[...], preferred_element_type=jnp.float32) + bo_ref[...]
    o_ref[...] = _layernorm(x + ffn, g_ref[...], b_ref[...]).astype(o_ref.dtype)


# ---------------- kernel wrappers ----------------
def _row_tile(m):
    return 8 if m % 8 == 0 else m


def qkv_linear(x, w, b):
    M, K = x.shape
    N = w.shape[1]
    TM = _row_tile(M)
    return pl.pallas_call(
        _matmul_bias_kernel,
        out_shape=jax.ShapeDtypeStruct((M, N), x.dtype),
        grid=(M // TM,),
        in_specs=[
            pl.BlockSpec((TM, K), lambda i: (i, 0)),
            pl.BlockSpec((K, N), lambda i: (0, 0)),
            pl.BlockSpec((1, N), lambda i: (0, 0)),
        ],
        out_specs=pl.BlockSpec((TM, N), lambda i: (i, 0)),
        compiler_params=pltpu.CompilerParams(dimension_semantics=("parallel",)),
    )(x, w, b.reshape(1, N))


def layernorm(x, gamma, beta):
    M, D = x.shape
    TM = _row_tile(M)
    return pl.pallas_call(
        _ln_kernel,
        out_shape=jax.ShapeDtypeStruct((M, D), x.dtype),
        grid=(M // TM,),
        in_specs=[
            pl.BlockSpec((TM, D), lambda i: (i, 0)),
            pl.BlockSpec((1, D), lambda i: (0, 0)),
            pl.BlockSpec((1, D), lambda i: (0, 0)),
        ],
        out_specs=pl.BlockSpec((TM, D), lambda i: (i, 0)),
        compiler_params=pltpu.CompilerParams(dimension_semantics=("parallel",)),
    )(x, gamma.reshape(1, D), beta.reshape(1, D))


def attn_block(qkv, x, mask_add, wo, bo, ln_g, ln_b):
    B, S, D3 = qkv.shape
    D = x.shape[-1]
    kern = functools.partial(_attn_block_kernel, heads=HEADS)
    return pl.pallas_call(
        kern,
        out_shape=jax.ShapeDtypeStruct((B, S, D), x.dtype),
        grid=(B,),
        in_specs=[
            pl.BlockSpec((None, S, D3), lambda b: (b, 0, 0)),  # qkv, squeezed batch
            pl.BlockSpec((None, S, D), lambda b: (b, 0, 0)),   # residual
            pl.BlockSpec((None, 1, S), lambda b: (b, 0, 0)),   # additive mask
            pl.BlockSpec((D, D), lambda b: (0, 0)),            # wo
            pl.BlockSpec((1, D), lambda b: (0, 0)),            # bo
            pl.BlockSpec((1, D), lambda b: (0, 0)),            # ln gamma
            pl.BlockSpec((1, D), lambda b: (0, 0)),            # ln beta
        ],
        out_specs=pl.BlockSpec((None, S, D), lambda b: (b, 0, 0)),
        compiler_params=pltpu.CompilerParams(dimension_semantics=("parallel",)),
    )(qkv, x, mask_add, wo, bo.reshape(1, D), ln_g.reshape(1, D), ln_b.reshape(1, D))


def ffn_block(x, wi, bi, wo2, bo2, ln_g, ln_b):
    M, D = x.shape
    I = wi.shape[1]
    TM = _row_tile(M)
    return pl.pallas_call(
        _ffn_block_kernel,
        out_shape=jax.ShapeDtypeStruct((M, D), x.dtype),
        grid=(M // TM,),
        in_specs=[
            pl.BlockSpec((TM, D), lambda i: (i, 0)),
            pl.BlockSpec((D, I), lambda i: (0, 0)),
            pl.BlockSpec((1, I), lambda i: (0, 0)),
            pl.BlockSpec((I, D), lambda i: (0, 0)),
            pl.BlockSpec((1, D), lambda i: (0, 0)),
            pl.BlockSpec((1, D), lambda i: (0, 0)),
            pl.BlockSpec((1, D), lambda i: (0, 0)),
        ],
        out_specs=pl.BlockSpec((TM, D), lambda i: (i, 0)),
        compiler_params=pltpu.CompilerParams(dimension_semantics=("parallel",)),
    )(x, wi, bi.reshape(1, I), wo2, bo2.reshape(1, D), ln_g.reshape(1, D), ln_b.reshape(1, D))


# ---------------- BERT forward (glue in plain JAX, hot paths in Pallas) ----------------
def bert_layer(x, p, mask_add, B, S):
    D = HIDDEN
    x2 = x.reshape(B * S, D)
    qkv = qkv_linear(x2, p["wqkv"], p["bqkv"])                       # (B*S, 3D), q pre-scaled
    x = attn_block(qkv.reshape(B, S, 3 * D), x, mask_add,
                   p["wo"], p["bo"], p["ln1_g"], p["ln1_b"])         # (B, S, D)
    x2 = ffn_block(x.reshape(B * S, D), p["wi"], p["bi"],
                   p["wo2"], p["bo2"], p["ln2_g"], p["ln2_b"])       # (B*S, D)
    return x2.reshape(B, S, D)


def encoder_forward(params, input_ids, attention_mask, token_type_ids):
    """Equivalent of Encoder.forward: runs BERT and returns last_hidden_state[:, 0, :]."""
    B, S = input_ids.shape
    # embedding gathers are glue (plain JAX)
    emb = (
        params["word_emb"][input_ids]
        + params["pos_emb"][:S][None, :, :]
        + params["type_emb"][token_type_ids]
    )
    x = layernorm(emb.reshape(B * S, HIDDEN),
                  params["emb_ln_g"], params["emb_ln_b"]).reshape(B, S, HIDDEN)

    mask_add = ((1.0 - attention_mask.astype(jnp.float32)) * -1e9).reshape(B, 1, S)

    for lp in params["layers"]:
        x = bert_layer(x, lp, mask_add, B, S)

    return x[:, 0, :]  # [CLS] token hidden state, shape (B, HIDDEN)


# ---------------- pure-JAX reference (for correctness check) ----------------
def encoder_forward_ref(params, input_ids, attention_mask, token_type_ids):
    B, S = input_ids.shape
    emb = (
        params["word_emb"][input_ids]
        + params["pos_emb"][:S][None, :, :]
        + params["type_emb"][token_type_ids]
    )
    x = _layernorm(emb, params["emb_ln_g"], params["emb_ln_b"])
    mask_add = ((1.0 - attention_mask.astype(jnp.float32)) * -1e9)[:, None, None, :]
    for p in params["layers"]:
        qkv = x @ p["wqkv"] + p["bqkv"]  # scale already folded into q-part
        q, k, v = jnp.split(qkv, 3, axis=-1)

        def split(t):
            return t.reshape(B, S, HEADS, HEAD_DIM).transpose(0, 2, 1, 3)

        q, k, v = split(q), split(k), split(v)
        s = jnp.einsum("bhqd,bhkd->bhqk", q, k) + mask_add
        pa = jax.nn.softmax(s, axis=-1)
        ctx = jnp.einsum("bhqk,bhkd->bhqd", pa, v).transpose(0, 2, 1, 3).reshape(B, S, HIDDEN)
        x = _layernorm(x + ctx @ p["wo"] + p["bo"], p["ln1_g"], p["ln1_b"])
        inter = _gelu_tanh(x @ p["wi"] + p["bi"])
        x = _layernorm(x + inter @ p["wo2"] + p["bo2"], p["ln2_g"], p["ln2_b"])
    return x[:, 0, :]


# ---------------- deterministic parameter init ----------------
def init_params(key):
    def norm(k, shape, scale=0.02):
        return scale * jax.random.normal(k, shape, jnp.float32)

    keys = jax.random.split(key, 3 + LAYERS)
    params = {
        "word_emb": norm(keys[0], (VOCAB, HIDDEN)),
        "pos_emb": norm(keys[1], (MAX_POS, HIDDEN)),
        "type_emb": norm(keys[2], (TYPE_VOCAB, HIDDEN)),
        "emb_ln_g": jnp.ones((HIDDEN,), jnp.float32),
        "emb_ln_b": jnp.zeros((HIDDEN,), jnp.float32),
        "layers": [],
    }
    attn_scale = 1.0 / (HEAD_DIM ** 0.5)
    for l in range(LAYERS):
        lk = jax.random.split(keys[3 + l], 6)
        wq, wk, wv = norm(lk[0], (HIDDEN, HIDDEN)), norm(lk[1], (HIDDEN, HIDDEN)), norm(lk[2], (HIDDEN, HIDDEN))
        bq = jnp.zeros((HIDDEN,), jnp.float32)
        bk = jnp.zeros((HIDDEN,), jnp.float32)
        bv = jnp.zeros((HIDDEN,), jnp.float32)
        params["layers"].append(
            {
                # fused QKV weights; 1/sqrt(head_dim) folded into the Q section
                "wqkv": jnp.concatenate([wq * attn_scale, wk, wv], axis=1),
                "bqkv": jnp.concatenate([bq * attn_scale, bk, bv], axis=0),
                "wo": norm(lk[3], (HIDDEN, HIDDEN)),
                "bo": jnp.zeros((HIDDEN,), jnp.float32),
                "ln1_g": jnp.ones((HIDDEN,), jnp.float32),
                "ln1_b": jnp.zeros((HIDDEN,), jnp.float32),
                "wi": norm(lk[4], (HIDDEN, INTER)),
                "bi": jnp.zeros((INTER,), jnp.float32),
                "wo2": norm(lk[5], (INTER, HIDDEN)),
                "bo2": jnp.zeros((HIDDEN,), jnp.float32),
                "ln2_g": jnp.ones((HIDDEN,), jnp.float32),
                "ln2_b": jnp.zeros((HIDDEN,), jnp.float32),
            }
        )
    return params


if __name__ == "__main__":
    key = jax.random.PRNGKey(0)
    pkey, ikey = jax.random.split(key)
    params = init_params(pkey)

    B, S = 2, 8
    input_ids = jax.random.randint(ikey, (B, S), 0, VOCAB)
    attention_mask = jnp.ones((B, S), jnp.int32).at[1, 6:].set(0)  # pad last 2 tokens of seq 1
    token_type_ids = jnp.zeros((B, S), jnp.int32)

    out = encoder_forward(params, input_ids, attention_mask, token_type_ids)
    out = jax.block_until_ready(out)

    assert out.shape == (B, HIDDEN), out.shape
    assert bool(jnp.all(jnp.isfinite(out)))

    ref = encoder_forward_ref(params, input_ids, attention_mask, token_type_ids)
    max_err = float(jnp.max(jnp.abs(out - ref)))
    assert max_err < 1e-2, f"mismatch vs reference: {max_err}"

    print("KERNEL_OK")
</pallas_src>

<mosaic_0001>
module attributes {stable_mosaic.version = 11 : i64} {
  func.func @_ln_kernel(%arg0: i32, %arg1: memref<8x32xf32, #tpu.memory_space<vmem>>, %arg2: memref<1x32xf32, #tpu.memory_space<vmem>>, %arg3: memref<1x32xf32, #tpu.memory_space<vmem>>, %arg4: memref<8x32xf32, #tpu.memory_space<vmem>>) attributes {dimension_semantics = [#tpu.dimension_semantics<parallel>], iteration_bounds = array<i64: 2>, scalar_prefetch = 0 : i64, scratch_operands = 0 : i64, tpu.core_type = #tpu.core_type<tc>, window_params = [{transform_indices = @transform_0, window_bounds = array<i64: 8, 32>}, {pipeline_mode = #tpu.pipeline_mode<synchronous>, transform_indices = @transform_1, window_bounds = array<i64: 1, 32>}, {pipeline_mode = #tpu.pipeline_mode<synchronous>, transform_indices = @transform_2, window_bounds = array<i64: 1, 32>}, {transform_indices = @transform_3, window_bounds = array<i64: 8, 32>}]} {
    %c0 = arith.constant 0 : index
    %c0_0 = arith.constant 0 : index
    %0 = vector.load %arg1[%c0, %c0_0] : memref<8x32xf32, #tpu.memory_space<vmem>>, vector<8x32xf32>
    %c0_1 = arith.constant 0 : index
    %c0_2 = arith.constant 0 : index
    %1 = vector.load %arg2[%c0_1, %c0_2] : memref<1x32xf32, #tpu.memory_space<vmem>>, vector<1x32xf32>
    %c0_3 = arith.constant 0 : index
    %c0_4 = arith.constant 0 : index
    %2 = vector.load %arg3[%c0_3, %c0_4] : memref<1x32xf32, #tpu.memory_space<vmem>>, vector<1x32xf32>
    %cst = arith.constant dense<0.000000e+00> : vector<8xf32>
    %3 = vector.multi_reduction <add>, %0, %cst [1] : vector<8x32xf32> to vector<8xf32>
    %4 = vector.shape_cast %3 : vector<8xf32> to vector<8x1xf32>
    %cst_5 = arith.constant 3.200000e+01 : f32
    %5 = vector.broadcast %cst_5 : f32 to vector<8x1xf32>
    %6 = arith.divf %4, %5 : vector<8x1xf32>
    %7 = vector.broadcast %6 : vector<8x1xf32> to vector<8x32xf32>
    %8 = arith.subf %0, %7 : vector<8x32xf32>
    %9 = arith.mulf %8, %8 : vector<8x32xf32>
    %cst_6 = arith.constant dense<0.000000e+00> : vector<8xf32>
    %10 = vector.multi_reduction <add>, %9, %cst_6 [1] : vector<8x32xf32> to vector<8xf32>
    %11 = vector.shape_cast %10 : vector<8xf32> to vector<8x1xf32>
    %cst_7 = arith.constant 3.200000e+01 : f32
    %12 = vector.broadcast %cst_7 : f32 to vector<8x1xf32>
    %13 = arith.divf %11, %12 : vector<8x1xf32>
    %14 = vector.broadcast %6 : vector<8x1xf32> to vector<8x32xf32>
    %15 = arith.subf %0, %14 : vector<8x32xf32>
    %cst_8 = arith.constant 9.99999996E-13 : f32
    %16 = vector.broadcast %cst_8 : f32 to vector<8x1xf32>
    %17 = arith.addf %13, %16 : vector<8x1xf32>
    %18 = math.rsqrt %17 : vector<8x1xf32>
    %19 = vector.broadcast %18 : vector<8x1xf32> to vector<8x32xf32>
    %20 = arith.mulf %15, %19 : vector<8x32xf32>
    %21 = vector.broadcast %1 : vector<1x32xf32> to vector<8x32xf32>
    %22 = arith.mulf %20, %21 : vector<8x32xf32>
    %23 = vector.broadcast %2 : vector<1x32xf32> to vector<8x32xf32>
    %24 = arith.addf %22, %23 : vector<8x32xf32>
    %c0_9 = arith.constant 0 : index
    %c0_10 = arith.constant 0 : index
    %25 = vector.load %arg4[%c0_9, %c0_10] : memref<8x32xf32, #tpu.memory_space<vmem>>, vector<8x32xf32>
    tpu.vector_store %arg4[%c0_9, %c0_10], %24 {strides = array<i32>} : memref<8x32xf32, #tpu.memory_space<vmem>>, vector<8x32xf32>,
    return
  }
  func.func @transform_0(%arg0: i32) -> (i32, i32) {
    %c0_i32 = arith.constant 0 : i32
    %c0_i32_0 = arith.constant 0 : i32
    return %arg0, %c0_i32 : i32, i32
  }
  func.func @transform_1(%arg0: i32) -> (i32, i32) {
    %c0_i32 = arith.constant 0 : i32
    %c0_i32_0 = arith.constant 0 : i32
    %c0_i32_1 = arith.constant 0 : i32
    return %c0_i32, %c0_i32_0 : i32, i32
  }
  func.func @transform_2(%arg0: i32) -> (i32, i32) {
    %c0_i32 = arith.constant 0 : i32
    %c0_i32_0 = arith.constant 0 : i32
    %c0_i32_1 = arith.constant 0 : i32
    return %c0_i32, %c0_i32_0 : i32, i32
  }
  func.func @transform_3(%arg0: i32) -> (i32, i32) {
    %c0_i32 = arith.constant 0 : i32
    %c0_i32_0 = arith.constant 0 : i32
    return %arg0, %c0_i32 : i32, i32
  }
}

</mosaic_0001>

<llo_original>
// kernel: tpu_custom_call.1
$region0: #{tpu_custom_call.1}
  #allocation0 [shape = 'u32[]', space=smem, size = 0x4, offset = 0x4, fixed_abs, tag = 'smem constant byte address 0x4 - core index']
  #allocation1 [shape = 'u32[144,128]{1,0:T(1,128)}', space=vmem, size = 0x12000, scoped, tag = 'internal scratch']
  %s0 = inlined_call_operand.hbm [shape: f32[16,32], index: 0, kind: input, shape index: {}]
  %s1 = inlined_call_operand.vmem [shape: f32[1,32], index: 1, kind: input, shape index: {}]
  %s2 = inlined_call_operand.vmem [shape: f32[1,32], index: 2, kind: input, shape index: {}]
  %s3 = inlined_call_operand.hbm [shape: f32[16,32], index: 3, kind: output, shape index: {}]
  %s4 = sld [smem:[#allocation0]]
  $region49: #{tpu_custom_call.1} parent=0
    _
  %s6 = ssub.s32 1, %s4
  %s7 = scalar_select 0, %s6, %s4
  $region1: #{tpu_custom_call.1} parent=0
    #allocation2 [shape = 'u8[8192]{0}', space=vmem, size = 0x2000, scoped, tag = 'input window, operand 0']
    #allocation3 [shape = 's32[2]{0}', space=sflag, size = 0x8, scoped, tag = 'scoped memory for tpu_custom_call.1']
    #allocation4 [shape = 's32[2]{0}', space=sflag, size = 0x8, scoped, tag = 'scoped memory for tpu_custom_call.1']
    #allocation5 [shape = 'u8[8192]{0}', space=vmem, size = 0x2000, scoped, tag = 'output window, operand 0']
    %8 = vsyncpa [#allocation3], 0
    %s9 = scalar_lea.sflag [#allocation3], 1
    %10 = vsyncpa %s9, 0
    %11 = vsyncpa [#allocation4], 0
    %s12 = scalar_lea.sflag [#allocation4], 1
    %13 = vsyncpa %s12, 0
    loop: start=0, step=1, limit=4
    $region2: #{tpu_custom_call.1} parent=1 // loop_pre_header
      _
    $region3: #{tpu_custom_call.1} parent=1 // loop_header
      %s15 = sphi 0, %s19
      %p16 = scmp.ge.s32.totalorder %s15, 4
      %s25 = sphi 0, %s27
      %s28 = sphi 0, %s25
      %s29 = sphi 0, %s28
      %s45 = sphi 0, %s29
      %s49 = sphi 0, %s49
      %s51 = sphi 0, %s49
      %s52 = sphi 0, %s51
      %s66 = sphi 0, %s52
      %s70 = sphi 0, %s70
      %s72 = sphi 0, %s70
      %s73 = sphi 0, %s72
      %s87 = sphi 0, %s73
      %s93 = sphi 0, %s95
      %s96 = sphi 0, %s93
      %s97 = sphi 0, %s96
      %s113 = sphi 0, %s97
    $region4: #{tpu_custom_call.1} parent=1 // loop_header_branch
      %18 = sbr.rel (%p16) target = $region8
    $region5: #{tpu_custom_call.1} parent=1 // loop_body
      %s20 = ssub.s32 %s15, 1
      %s21 = ssub.s32 %s15, 2
      %s22 = sadd.s32 %s15, 1
      %s23 = ssub.s32 %s15, %s22
      %p24 = scmp.eq.s32.totalorder %s23, 0
      %s26 = sadd.s32 %s25, 1
      %s27 = scalar_select %p24, %s25, %s26
      %p30 = pneg %p24
      %p31 = scmp.eq.s32.totalorder %s15, 1
      %p32 = por %p30, %p31
      %p33 = scmp.ne.s32.totalorder %s25, %s28
      %p34 = scmp.eq.s32.totalorder %s15, 0
      %p35 = por %p33, %p34
      %p36 = scmp.ne.s32.totalorder %s25, %s28
      %p37 = scmp.eq.s32.totalorder %s20, 1
      %p38 = por %p36, %p37
      %p39 = scmp.ne.s32.totalorder %s28, %s29
      %p40 = scmp.eq.s32.totalorder %s20, 0
      %p41 = por %p39, %p40
      %p42 = scmp.ne.s32.totalorder %s28, %s29
      %p43 = scmp.eq.s32.totalorder %s21, 1
      %p44 = por %p42, %p43
      %p46 = scmp.ne.s32.totalorder %s29, %s45
      %p47 = scmp.eq.s32.totalorder %s21, 0
      %p48 = por %p46, %p47
      %s50 = sadd.s32 %s49, 1
      %p53 = scmp.eq.s32.totalorder %s15, 1
      %p54 = scmp.ne.s32.totalorder %s49, %s51
      %p55 = scmp.eq.s32.totalorder %s15, 0
      %p56 = por %p54, %p55
      %p57 = scmp.ne.s32.totalorder %s49, %s51
      %p58 = scmp.eq.s32.totalorder %s20, 1
      %p59 = por %p57, %p58
      %p60 = scmp.ne.s32.totalorder %s51, %s52
      %p61 = scmp.eq.s32.totalorder %s20, 0
      %p62 = por %p60, %p61
      %p63 = scmp.ne.s32.totalorder %s51, %s52
      %p64 = scmp.eq.s32.totalorder %s21, 1
      %p65 = por %p63, %p64
      %p67 = scmp.ne.s32.totalorder %s52, %s66
      %p68 = scmp.eq.s32.totalorder %s21, 0
      %p69 = por %p67, %p68
      %s71 = sadd.s32 %s70, 1
      %p74 = scmp.eq.s32.totalorder %s15, 1
      %p75 = scmp.ne.s32.totalorder %s70, %s72
      %p76 = scmp.eq.s32.totalorder %s15, 0
      %p77 = por %p75, %p76
      %p78 = scmp.ne.s32.totalorder %s70, %s72
      %p79 = scmp.eq.s32.totalorder %s20, 1
      %p80 = por %p78, %p79
      %p81 = scmp.ne.s32.totalorder %s72, %s73
      %p82 = scmp.eq.s32.totalorder %s20, 0
      %p83 = por %p81, %p82
      %p84 = scmp.ne.s32.totalorder %s72, %s73
      %p85 = scmp.eq.s32.totalorder %s21, 1
      %p86 = por %p84, %p85
      %p88 = scmp.ne.s32.totalorder %s73, %s87
      %p89 = scmp.eq.s32.totalorder %s21, 0
      %p90 = por %p88, %p89
      %s91 = ssub.s32 %s15, %s22
      %p92 = scmp.eq.s32.totalorder %s91, 0
      %s94 = sadd.s32 %s93, 1
      %s95 = scalar_select %p92, %s93, %s94
      %p98 = pneg %p92
      %p99 = scmp.eq.s32.totalorder %s15, 1
      %p100 = por %p98, %p99
      %p101 = scmp.ne.s32.totalorder %s93, %s96
      %p102 = scmp.eq.s32.totalorder %s15, 0
      %p103 = por %p101, %p102
      %p104 = scmp.ne.s32.totalorder %s93, %s96
      %p105 = scmp.eq.s32.totalorder %s20, 1
      %p106 = por %p104, %p105
      %p107 = scmp.ne.s32.totalorder %s96, %s97
      %p108 = scmp.eq.s32.totalorder %s20, 0
      %p109 = por %p107, %p108
      %p110 = scmp.ne.s32.totalorder %s96, %s97
      %p111 = scmp.eq.s32.totalorder %s21, 1
      %p112 = por %p110, %p111
      %p114 = scmp.ne.s32.totalorder %s97, %s113
      %p115 = scmp.eq.s32.totalorder %s21, 0
      %p116 = por %p114, %p115
      %p117 = scmp.le.s32.totalorder 1, %s15
      %p118 = scmp.lt.s32.totalorder %s15, 3
      %p119 = pnand %p117, %p118
      %p120 = pneg %p119
      // Predicated region
      $region9: #{tpu_custom_call.1} parent=5 // pred_check
        _
      $region10: #{tpu_custom_call.1} parent=5 // pred_check_branch
        %122 = sbr.rel (%p119) target = $region12
      $region11: #{tpu_custom_call.1} parent=5 // pred_region
        %s123 = ssub.s32 %s15, 1
        // Predicated region
        $region13: #{tpu_custom_call.1} parent=11 // pred_check
          %p124 = pneg %p62
        $region14: #{tpu_custom_call.1} parent=11 // pred_check_branch
          %126 = sbr.rel (%p124) target = $region16
        $region15: #{tpu_custom_call.1} parent=11 // pred_region
          _
        $region16: #{tpu_custom_call.1} parent=11 // pred_fallthru
          _
        // Predicated region
        $region17: #{tpu_custom_call.1} parent=11 // pred_check
          %p127 = pneg %p83
        $region18: #{tpu_custom_call.1} parent=11 // pred_check_branch
          %129 = sbr.rel (%p127) target = $region20
        $region19: #{tpu_custom_call.1} parent=11 // pred_region
          _
        $region20: #{tpu_custom_call.1} parent=11 // pred_fallthru
          _
      $region12: #{tpu_custom_call.1} parent=5 // pred_fallthru
        _
      %p130 = scmp.lt.s32.totalorder %s15, 2
      // Predicated region
      $region21: #{tpu_custom_call.1} parent=5 // pred_check
        %p131 = pneg %p130
      $region22: #{tpu_custom_call.1} parent=5 // pred_check_branch
        %133 = sbr.rel (%p131) target = $region24
      $region23: #{tpu_custom_call.1} parent=5 // pred_region
        // Predicated region
        $region25: #{tpu_custom_call.1} parent=23 // pred_check
          %p134 = pneg %p35
        $region26: #{tpu_custom_call.1} parent=23 // pred_check_branch
          %136 = sbr.rel (%p134) target = $region28
        $region27: #{tpu_custom_call.1} parent=23 // pred_region
          %s137 = sand.u32 %s25, 1
          %s138 = scalar_lea.sflag [#allocation3], %s137
          %s139 = sand.u32 %s25, 1
          %s140 = smul.addr %s139, 8
          %s141 = scalar_lea.vmem [#allocation2], %s140
          %s143 = ssub.s32 128, 128
          %144 = vsyncadd %s138, %s143
          %s145 = smul.addr %s15, 128
          %s146 = scalar_lea.hbm %s0, %s145
          %s148 = sshll.u32 %s141, 4
          %s149 = int_to_ptr.vmem [resolvable:$true] %s148
          %151 = dma.hbm_to_vmem [thread:$0]  %s146, 128, %s149, %s138
        $region28: #{tpu_custom_call.1} parent=23 // pred_fallthru
          _
      $region24: #{tpu_custom_call.1} parent=5 // pred_fallthru
        _
      %p152 = scmp.le.s32.totalorder 1, %s15
      %p153 = scmp.lt.s32.totalorder %s15, 3
      %p154 = pnand %p152, %p153
      %p155 = pneg %p154
      // Predicated region
      $region29: #{tpu_custom_call.1} parent=5 // pred_check
        _
      $region30: #{tpu_custom_call.1} parent=5 // pred_check_branch
        %157 = sbr.rel (%p154) target = $region32
      $region31: #{tpu_custom_call.1} parent=5 // pred_region
        %s158 = ssub.s32 %s15, 1
        %s159 = sand.u32 %s28, 1
        %s160 = scalar_lea.sflag [#allocation3], %s159
        %s161 = sand.u32 %s28, 1
        %s162 = smul.addr %s161, 8
        %s163 = scalar_lea.vmem [#allocation2], %s162
        // Predicated region
        $region33: #{tpu_custom_call.1} parent=31 // pred_check
          %p164 = pneg %p41
        $region34: #{tpu_custom_call.1} parent=31 // pred_check_branch
          %166 = sbr.rel (%p164) target = $region36
        $region35: #{tpu_custom_call.1} parent=31 // pred_region
          %167 = dma.done %s160, 128
        $region36: #{tpu_custom_call.1} parent=31 // pred_fallthru
          _
        %s168 = sand.u32 %s28, 1
        %s169 = scalar_lea.sflag [#allocation3], %s168
        %s170 = sand.u32 %s28, 1
        %s171 = smul.addr %s170, 8
        %s172 = scalar_lea.vmem [#allocation2], %s171
        %p173 = pneg %p41
        %p174 = pneg %p38
        %p175 = pneg %p62
        %p176 = pneg %p59
        %p177 = pneg %p83
        %p178 = pneg %p80
        %p179 = pneg %p109
        %p180 = pneg %p106
        %s181 = sand.u32 %s96, 1
        %s182 = scalar_lea.sflag [#allocation4], %s181
        %s183 = sand.u32 %s96, 1
        %s184 = smul.addr %s183, 8
        %s185 = scalar_lea.vmem [#allocation5], %s184
        %v186 = vld [vmem:[%s163] sm:$0xff]
        %v187 = vld [vmem:[%s1] sm:$0x1]
        %v188 = vld [vmem:[%s2] sm:$0x1]
        %vm189 = vcmask 261120
        %v190 = vsel %vm189, %v186, 0.0
        %191 = vadd.xlane.f32.xlu0 %v190
        %v192 = vpop.xlane.xlu0 %191
        %v193 = vrcp.pop 32.0
        %v194 = vmul.f32 %v192, %v193
        %v195 = vsub.f32 %v186, %v194
        %v196 = vmul.f32 %v195, %v195
        %v197 = vsel %vm189, %v196, 0.0
        %198 = vadd.xlane.f32.xlu0 %v197
        %v199 = vpop.xlane.xlu0 %198
        %v200 = vmul.f32 %v199, %v193
        %v201 = vadd.f32 %v200, 1e-12
        %v202 = vrsqrt.pop %v201
        %v203 = vmul.f32 %v195, %v202
        %v205 = vlaneseq
        %v206 = vshrl.u32 %v205, 7
        %v207 = vsub.s32 0, %v206
        %v208 = vrot.slane %v187, %v207
        %v210 = vmul.f32 %v203, %v208
        %v212 = vlaneseq
        %v213 = vshrl.u32 %v212, 7
        %v214 = vsub.s32 0, %v213
        %v215 = vrot.slane %v188, %v214
        %v217 = vadd.f32 %v210, %v215
        %218 = vst.msk [vmem:[%s185] sm:$0xff] %vm189, %v217
        %s219 = sand.u32 %s96, 1
        %s220 = scalar_lea.sflag [#allocation4], %s219
        %s221 = sand.u32 %s96, 1
        %s222 = smul.addr %s221, 8
        %s223 = scalar_lea.vmem [#allocation5], %s222
        // Predicated region
        $region37: #{tpu_custom_call.1} parent=31 // pred_check
          %p224 = pneg %p106
        $region38: #{tpu_custom_call.1} parent=31 // pred_check_branch
          %226 = sbr.rel (%p224) target = $region40
        $region39: #{tpu_custom_call.1} parent=31 // pred_region
          %s228 = ssub.s32 128, 128
          %229 = vsyncadd %s220, %s228
          %s230 = smul.addr %s20, 128
          %s231 = scalar_lea.hbm %s3, %s230
          %s233 = sshll.u32 %s223, 4
          %s234 = int_to_ptr.vmem [resolvable:$true] %s233
          %236 = dma.vmem_to_hbm [thread:$0]  %s234, 128, %s231, %s220
        $region40: #{tpu_custom_call.1} parent=31 // pred_fallthru
          _
      $region32: #{tpu_custom_call.1} parent=5 // pred_fallthru
        _
      %p237 = scmp.le.s32.totalorder 2, %s15
      // Predicated region
      $region41: #{tpu_custom_call.1} parent=5 // pred_check
        %p238 = pneg %p237
      $region42: #{tpu_custom_call.1} parent=5 // pred_check_branch
        %240 = sbr.rel (%p238) target = $region44
      $region43: #{tpu_custom_call.1} parent=5 // pred_region
        %s241 = ssub.s32 %s15, 2
        // Predicated region
        $region45: #{tpu_custom_call.1} parent=43 // pred_check
          %p242 = pneg %p112
        $region46: #{tpu_custom_call.1} parent=43 // pred_check_branch
          %244 = sbr.rel (%p242) target = $region48
        $region47: #{tpu_custom_call.1} parent=43 // pred_region
          %s245 = sand.u32 %s97, 1
          %s246 = scalar_lea.sflag [#allocation4], %s245
          %s247 = sand.u32 %s97, 1
          %s248 = smul.addr %s247, 8
          %s249 = scalar_lea.vmem [#allocation5], %s248
          %250 = dma.done %s246, 128
        $region48: #{tpu_custom_call.1} parent=43 // pred_fallthru
          _
      $region44: #{tpu_custom_call.1} parent=5 // pred_fallthru
        _
    $region6: #{tpu_custom_call.1} parent=1 // loop_footer
      %s19 = sadd.s32 1, %s15
    $region7: #{tpu_custom_call.1} parent=1 // loop_footer_branch
      %14 = sbr.rel target = $region3
    $region8: #{tpu_custom_call.1} parent=1 // loop_exit
      _
    %251 = vsyncpa [#allocation3], 1
    %s252 = scalar_lea.sflag [#allocation3], 1
    %253 = vsyncpa %s252, 1
    %254 = vsyncpa [#allocation4], 1
    %s255 = scalar_lea.sflag [#allocation4], 1
    %256 = vsyncpa %s255, 1

</llo_original>
